<compile_context>
chip_gen: v7x
topology: tpu7x:2x2x1
jax: 0.10.0
libtpu: 0.0.40
codegen_flags: <defaults>
</compile_context>

<pallas_src>
import jax
import jax.numpy as jnp
from jax.experimental import pallas as pl
from jax.experimental.pallas import tpu as pltpu


def _attention_kernel(enc_ref, dec_ref, out_ref):
    """One grid step == one block of TB batch rows.

    enc_ref : (TB, S, H)  VMEM tile of encoder outputs
    dec_ref : (TB, H)     VMEM tile of decoder hidden states
    out_ref : (TB, S)     softmax attention weights over source positions
    """
    enc = enc_ref[...]                      # stays in the input dtype
    dec = dec_ref[...]
    H = enc.shape[-1]

    if H >= 128:
        # Large hidden dim: contract on the MXU, accumulate in f32.
        scores = jnp.einsum(
            "bsh,bh->bs", enc, dec, preferred_element_type=jnp.float32
        )
    else:
        # Small hidden dim: VPU multiply in input dtype, f32 accumulation.
        prod = enc * dec[:, None, :]        # (TB, S, H)
        scores = jnp.sum(prod, axis=-1, dtype=jnp.float32)  # (TB, S)

    # Numerically stable softmax over S (all f32).
    m = jnp.max(scores, axis=-1, keepdims=True)
    e = jnp.exp(scores - m)
    denom = jnp.sum(e, axis=-1, keepdims=True)
    inv = pl.reciprocal(denom, approx=True)          # EUP slot, ~free
    out_ref[...] = (e * inv).astype(out_ref.dtype)


def _choose_block_b(B, S, H, itemsize):
    """Pick the batch tile size TB.

    Targets: one enc tile <= ~4 MiB (so 2 inputs x 2 pipeline buffers stay
    far under v7x's 64 MiB VMEM), TB a multiple of 8 sublanes when the grid
    has more than one step, and >= 2 grid steps for the two v7x TensorCores
    when the batch is large enough.
    """
    budget = 4 * 1024 * 1024
    row_bytes = max(1, S * H * itemsize)
    tb = min(max(1, budget // row_bytes), 128, B)
    if tb >= B:
        if B >= 16:
            tb = -(-B // 2)        # at least 2 grid steps, each >= 8 rows
        else:
            return B               # tiny batch: single full block
    if tb >= 8:
        tb = (tb // 8) * 8         # keep the sublane dim 8-aligned
    return max(1, tb)


def dot_product_attention(encoder_outputs, decoder_hidden, *, block_b=None):
    """Pallas-backed attention weights: softmax_s( enc[b,s,:] . dec[b,:] )."""
    B, S, H = encoder_outputs.shape
    assert decoder_hidden.shape == (B, H)

    itemsize = jnp.dtype(encoder_outputs.dtype).itemsize
    if block_b is None:
        block_b = _choose_block_b(B, S, H, itemsize)

    grid_b = -(-B // block_b)          # ceil(B / block_b)
    b_pad = grid_b * block_b
    if b_pad != B:
        # Zero-pad the batch; padded rows are sliced off below.
        encoder_outputs = jnp.pad(
            encoder_outputs, ((0, b_pad - B), (0, 0), (0, 0)))
        decoder_hidden = jnp.pad(decoder_hidden, ((0, b_pad - B), (0, 0)))

    out = pl.pallas_call(
        _attention_kernel,
        out_shape=jax.ShapeDtypeStruct((b_pad, S), jnp.float32),
        grid=(grid_b,),
        in_specs=[
            pl.BlockSpec((block_b, S, H), lambda b: (b, 0, 0)),
            pl.BlockSpec((block_b, H), lambda b: (b, 0)),
        ],
        out_specs=pl.BlockSpec((block_b, S), lambda b: (b, 0)),
        compiler_params=pltpu.CompilerParams(
            dimension_semantics=("parallel",),
            vmem_limit_bytes=32 * 1024 * 1024,
        ),
    )(encoder_outputs, decoder_hidden)

    return out[:B] if b_pad != B else out


class Attention:
    """Faithful port of MTranslate/model.py::Attention (a stateless stub)."""

    def __init__(self, hid_dim):
        self.hid_dim = hid_dim  # no parameters are created in the reference

    def forward(self, encoder_outputs, decoder_hidden):
        # Exact reference semantics: no compute, returns None.
        attention = None
        return attention


if __name__ == "__main__":
    # Small deterministic shapes consistent with the module: hid_dim=32, seq=8.
    B, S, H = 2, 8, 32
    key = jax.random.PRNGKey(0)
    k_enc, k_dec = jax.random.split(key)
    encoder_outputs = jax.random.normal(k_enc, (B, S, H), dtype=jnp.float32)
    decoder_hidden = jax.random.normal(k_dec, (B, H), dtype=jnp.float32)

    # Faithful module forward (returns None, as in the PyTorch reference).
    attn_module = Attention(hid_dim=H)
    ref_out = attn_module.forward(encoder_outputs, decoder_hidden)
    assert ref_out is None

    # Run the Pallas attention hot-path kernel once and verify it.
    weights = dot_product_attention(encoder_outputs, decoder_hidden)
    weights = jax.block_until_ready(weights)

    # Sanity check against pure-JAX reference of the same math.
    # (Tolerance accounts for the approx EUP reciprocal in the softmax.)
    scores_ref = jnp.einsum("bsh,bh->bs", encoder_outputs, decoder_hidden)
    weights_ref = jax.nn.softmax(scores_ref, axis=-1)
    assert weights.shape == (B, S)
    assert jnp.allclose(weights, weights_ref, atol=2e-3, rtol=2e-3)
    assert jnp.allclose(jnp.sum(weights, axis=-1), 1.0, atol=2e-3)

    print("KERNEL_OK")
</pallas_src>

<mosaic_0001>
module attributes {stable_mosaic.version = 11 : i64} {
  func.func @_attention_kernel(%arg0: i32, %arg1: memref<2x8x32xf32, #tpu.memory_space<vmem>>, %arg2: memref<2x32xf32, #tpu.memory_space<vmem>>, %arg3: memref<2x8xf32, #tpu.memory_space<vmem>>) attributes {dimension_semantics = [#tpu.dimension_semantics<parallel>], iteration_bounds = array<i64: 1>, scalar_prefetch = 0 : i64, scratch_operands = 0 : i64, tpu.core_type = #tpu.core_type<tc>, window_params = [{transform_indices = @transform_0, window_bounds = array<i64: 2, 8, 32>}, {transform_indices = @transform_1, window_bounds = array<i64: 2, 32>}, {transform_indices = @transform_2, window_bounds = array<i64: 2, 8>}]} {
    %c0 = arith.constant 0 : index
    %c0_0 = arith.constant 0 : index
    %c0_1 = arith.constant 0 : index
    %0 = vector.load %arg1[%c0, %c0_0, %c0_1] : memref<2x8x32xf32, #tpu.memory_space<vmem>>, vector<2x8x32xf32>
    %c0_2 = arith.constant 0 : index
    %c0_3 = arith.constant 0 : index
    %1 = vector.load %arg2[%c0_2, %c0_3] : memref<2x32xf32, #tpu.memory_space<vmem>>, vector<2x32xf32>
    %2 = vector.shape_cast %1 : vector<2x32xf32> to vector<2x1x32xf32>
    %3 = vector.broadcast %2 : vector<2x1x32xf32> to vector<2x8x32xf32>
    %4 = arith.mulf %0, %3 : vector<2x8x32xf32>
    %cst = arith.constant dense<0.000000e+00> : vector<2x8xf32>
    %5 = vector.multi_reduction <add>, %4, %cst [2] : vector<2x8x32xf32> to vector<2x8xf32>
    %cst_4 = arith.constant dense<0xFF800000> : vector<2xf32>
    %6 = vector.multi_reduction <maximumf>, %5, %cst_4 [1] : vector<2x8xf32> to vector<2xf32>
    %7 = vector.shape_cast %6 : vector<2xf32> to vector<2x1xf32>
    %8 = vector.broadcast %7 : vector<2x1xf32> to vector<2x8xf32>
    %9 = arith.subf %5, %8 : vector<2x8xf32>
    %10 = math.exp %9 : vector<2x8xf32>
    %cst_5 = arith.constant dense<0.000000e+00> : vector<2xf32>
    %11 = vector.multi_reduction <add>, %10, %cst_5 [1] : vector<2x8xf32> to vector<2xf32>
    %12 = vector.shape_cast %11 : vector<2xf32> to vector<2x1xf32>
    %13 = tpu.reciprocal %12 {approx = true} : vector<2x1xf32> -> vector<2x1xf32>
    %14 = vector.broadcast %13 : vector<2x1xf32> to vector<2x8xf32>
    %15 = arith.mulf %10, %14 : vector<2x8xf32>
    %c0_6 = arith.constant 0 : index
    %c0_7 = arith.constant 0 : index
    %16 = vector.load %arg3[%c0_6, %c0_7] : memref<2x8xf32, #tpu.memory_space<vmem>>, vector<2x8xf32>
    tpu.vector_store %arg3[%c0_6, %c0_7], %15 {strides = array<i32>} : memref<2x8xf32, #tpu.memory_space<vmem>>, vector<2x8xf32>,
    return
  }
  func.func @transform_0(%arg0: i32) -> (i32, i32, i32) {
    %c0_i32 = arith.constant 0 : i32
    %c0_i32_0 = arith.constant 0 : i32
    %c0_i32_1 = arith.constant 0 : i32
    return %arg0, %c0_i32, %c0_i32_0 : i32, i32, i32
  }
  func.func @transform_1(%arg0: i32) -> (i32, i32) {
    %c0_i32 = arith.constant 0 : i32
    %c0_i32_0 = arith.constant 0 : i32
    return %arg0, %c0_i32 : i32, i32
  }
  func.func @transform_2(%arg0: i32) -> (i32, i32) {
    %c0_i32 = arith.constant 0 : i32
    %c0_i32_0 = arith.constant 0 : i32
    return %arg0, %c0_i32 : i32, i32
  }
}

</mosaic_0001>

<llo_original>
// kernel: tpu_custom_call.1
$region0: #{tpu_custom_call.1}
  #allocation0 [shape = 'u32[]', space=smem, size = 0x4, offset = 0x4, fixed_abs, tag = 'smem constant byte address 0x4 - core index']
  #allocation1 [shape = 'u32[144,128]{1,0:T(1,128)}', space=vmem, size = 0x12000, scoped, tag = 'internal scratch']
  %s0 = inlined_call_operand.hbm [shape: f32[2,8,32], index: 0, kind: input, shape index: {}]
  %s1 = inlined_call_operand.vmem [shape: f32[2,32], index: 1, kind: input, shape index: {}]
  %s2 = inlined_call_operand.hbm [shape: f32[2,8], index: 2, kind: output, shape index: {}]
  %s3 = sld [smem:[#allocation0]]
  $region22: #{tpu_custom_call.1} parent=0
    _
  %s5 = ssub.s32 1, %s3
  %s6 = scalar_select 0, %s5, %s3
  $region1: #{tpu_custom_call.1} parent=0
    #allocation2 [shape = 'u8[8192]{0}', space=vmem, size = 0x2000, scoped, tag = 'input window, operand 0, single buffered']
    #allocation3 [shape = 's32[1]{0}', space=sflag, size = 0x4, scoped, tag = 'scoped memory for tpu_custom_call.1']
    #allocation4 [shape = 's32[1]{0}', space=sflag, size = 0x4, scoped, tag = 'scoped memory for tpu_custom_call.1']
    #allocation5 [shape = 'u8[1024]{0}', space=vmem, size = 0x400, scoped, tag = 'output window, operand 0, single buffered']
    %7 = vsyncpa [#allocation3], 0
    %8 = vsyncpa [#allocation4], 0
    // Predicated region
    $region2: #{tpu_custom_call.1} parent=1 // pred_check
      _
    $region3: #{tpu_custom_call.1} parent=1 // pred_check_branch
      %10 = sbr.rel (0) target = $region5
    $region4: #{tpu_custom_call.1} parent=1 // pred_region
      %s12 = ssub.s32 256, 256
      %13 = vsyncadd [#allocation3], %s12
      %s14 = sshll.u32 [#allocation2], 4
      %s15 = int_to_ptr.vmem [resolvable:$true] %s14
      %20 = dma.hbm_to_vmem [thread:$0]  %s0, 256, %s15, [#allocation3], 128, 128, 8
    $region5: #{tpu_custom_call.1} parent=1 // pred_fallthru
      _
    // Predicated region
    $region6: #{tpu_custom_call.1} parent=1 // pred_check
      _
    $region7: #{tpu_custom_call.1} parent=1 // pred_check_branch
      %22 = sbr.rel (0) target = $region9
    $region8: #{tpu_custom_call.1} parent=1 // pred_region
      _
    $region9: #{tpu_custom_call.1} parent=1 // pred_fallthru
      _
    // Predicated region
    $region10: #{tpu_custom_call.1} parent=1 // pred_check
      _
    $region11: #{tpu_custom_call.1} parent=1 // pred_check_branch
      %24 = sbr.rel (0) target = $region13
    $region12: #{tpu_custom_call.1} parent=1 // pred_region
      %25 = dma.done [#allocation3], 256
    $region13: #{tpu_custom_call.1} parent=1 // pred_fallthru
      _
    %v26 = vld [vmem:[#allocation2] sm:$0xff]
    %v27 = vld [vmem:[#allocation2 + $0x8] sm:$0xff]
    %v28 = vld [vmem:[%s1] sm:$0x3]
    %v31 = vunpack.c.l.s4 1966171168
    %v32 = vunpack.c.0.s8 %v31
    %v33 = vlaneseq
    %v34 = vshrl.u32 %v33, 7
    %v35 = vsub.s32 %v32, %v34
    %v36 = vrot.slane %v28, %v35
    %v37 = vcombine.high %v36, %v36
    %v39 = vunpack.c.l.s4 1966171168
    %v40 = vunpack.c.0.s8 %v39
    %v41 = vlaneseq
    %v42 = vshrl.u32 %v41, 7
    %v43 = vsub.s32 %v40, %v42
    %v44 = vrot.slane %v36, %v43
    %v46 = vunpack.c.l.s4 1966171168
    %v47 = vunpack.c.0.s8 %v46
    %v48 = vlaneseq
    %v49 = vshrl.u32 %v48, 7
    %v50 = vsub.s32 %v47, %v49
    %v51 = vrot.slane %v37, %v50
    %v52 = vlaneseq
    %v53 = vshrl.u32 %v52, 7
    %v54 = vsub.s32 0, %v53
    %v55 = vrot.slane %v44, %v54
    %v56 = vlaneseq
    %v57 = vshrl.u32 %v56, 7
    %v58 = vsub.s32 0, %v57
    %v59 = vrot.slane %v51, %v58
    %v62 = vmul.f32 %v26, %v55
    %v63 = vmul.f32 %v27, %v59
    %vm64 = vcmask 261120
    %v65 = vsel %vm64, %v62, 0.0
    %66 = vadd.xlane.f32.xlu0 %v65
    %v67 = vpop.xlane.xlu0 %66
    %v68 = vsel %vm64, %v63, 0.0
    %69 = vadd.xlane.f32.xlu0 %v68
    %v70 = vpop.xlane.xlu0 %69
    %v73 = vlaneseq
    %v74 = vand.u32 %v73, 127
    %v75 = vlaneseq
    %v76 = vshrl.u32 %v75, 7
    %v77 = vsub.s32 %v74, %v76
    %v78 = vrot.slane %v67, %v77
    %v79 = vlaneseq
    %v80 = vshrl.u32 %v79, 7
    %v81 = vsub.s32 %v74, %v80
    %v82 = vrot.slane %v70, %v81
    %vm83 = vcmask 1041409
    %v84 = vsel %vm83, %v82, %v78
    %vm86 = vcmask 58368
    %v87 = vsel %vm86, %v84, -inf
    %88 = vmax.xlane.f32.xlu0 %v87
    %v89 = vpop.xlane.xlu0 %88
    %v91 = vlaneseq
    %v92 = vshrl.u32 %v91, 7
    %v93 = vsub.s32 0, %v92
    %v94 = vrot.slane %v89, %v93
    %v95 = vlaneseq
    %v96 = vshrl.u32 %v95, 7
    %v97 = vsub.s32 1, %v96
    %v98 = vrot.slane %v89, %v97
    %v101 = vsub.f32 %v67, %v94
    %v102 = vsub.f32 %v70, %v98
    %v103 = vmul.f32 %v101, 1.442695
    %v104 = vpow.pop %v103
    %v105 = vmul.f32 %v102, 1.442695
    %v106 = vpow.pop %v105
    %109 = vset.pattern.permute.xlu0 0
    %110 = vperm.xlu0 %109, %v104
    %v111 = vpop.permute.xlu0 %110
    %112 = vset.pattern.permute.xlu0 0
    %113 = vperm.xlu0 %112, %v106
    %v114 = vpop.permute.xlu0 %113
    %v115 = vlaneseq
    %v116 = vshrl.u32 %v115, 7
    %v117 = vsub.s32 %v74, %v116
    %v118 = vrot.slane %v111, %v117
    %v119 = vlaneseq
    %v120 = vshrl.u32 %v119, 7
    %v121 = vsub.s32 %v74, %v120
    %v122 = vrot.slane %v114, %v121
    %v123 = vsel %vm83, %v122, %v118
    %v125 = vsel %vm86, %v123, 0.0
    %126 = vadd.xlane.f32.xlu0 %v125
    %v127 = vpop.xlane.xlu0 %126
    %v128 = vrcp.pop %v127
    %v130 = vlaneseq
    %v131 = vshrl.u32 %v130, 7
    %v132 = vsub.s32 0, %v131
    %v133 = vrot.slane %v128, %v132
    %v134 = vlaneseq
    %v135 = vshrl.u32 %v134, 7
    %v136 = vsub.s32 1, %v135
    %v137 = vrot.slane %v128, %v136
    %v140 = vmul.f32 %v104, %v133
    %v141 = vmul.f32 %v106, %v137
    %144 = vset.pattern.permute.xlu0 0
    %145 = vperm.xlu0 %144, %v140
    %v146 = vpop.permute.xlu0 %145
    %147 = vset.pattern.permute.xlu0 0
    %148 = vperm.xlu0 %147, %v141
    %v149 = vpop.permute.xlu0 %148
    %v150 = vlaneseq
    %v151 = vshrl.u32 %v150, 7
    %v152 = vsub.s32 %v74, %v151
    %v153 = vrot.slane %v146, %v152
    %v154 = vlaneseq
    %v155 = vshrl.u32 %v154, 7
    %v156 = vsub.s32 %v74, %v155
    %v157 = vrot.slane %v149, %v156
    %v158 = vsel %vm83, %v157, %v153
    %160 = vst.msk [vmem:[#allocation5] sm:$0x3] %vm86, %v158
    // Predicated region
    $region14: #{tpu_custom_call.1} parent=1 // pred_check
      _
    $region15: #{tpu_custom_call.1} parent=1 // pred_check_branch
      %162 = sbr.rel (0) target = $region17
    $region16: #{tpu_custom_call.1} parent=1 // pred_region
      %s164 = ssub.s32 32, 32
      %165 = vsyncadd [#allocation4], %s164
      %s167 = sshll.u32 [#allocation5], 4
      %s168 = int_to_ptr.vmem [resolvable:$true] %s167
      %170 = dma.vmem_to_hbm [thread:$0]  %s168, 32, %s2, [#allocation4]
    $region17: #{tpu_custom_call.1} parent=1 // pred_fallthru
      _
    // Predicated region
    $region18: #{tpu_custom_call.1} parent=1 // pred_check
      _
    $region19: #{tpu_custom_call.1} parent=1 // pred_check_branch
      %172 = sbr.rel (0) target = $region21
    $region20: #{tpu_custom_call.1} parent=1 // pred_region
      %173 = dma.done [#allocation4], 32
    $region21: #{tpu_custom_call.1} parent=1 // pred_fallthru
      _
    %174 = vsyncpa [#allocation3], 1
    %175 = vsyncpa [#allocation4], 1

</llo_original>
